<compile_context>
chip_gen: v6e
topology: v6e:2x2x1
jax: 0.10.0
libtpu: 0.0.40
codegen_flags: <defaults>
</compile_context>

<pallas_src>
import functools

import numpy as np
import jax
import jax.numpy as jnp
from jax.experimental import pallas as pl
from jax.experimental.pallas import tpu as pltpu


# ----------------------------- glue: linear-operator construction ------------

def adaptive_pool_matrix(in_size: int, out_size: int) -> np.ndarray:
    """Row-stochastic matrix reproducing nn.AdaptiveAvgPool1d/2d (per axis)."""
    P = np.zeros((out_size, in_size), dtype=np.float32)
    for i in range(out_size):
        start = (i * in_size) // out_size
        end = -((-(i + 1) * in_size) // out_size)  # ceil((i+1)*in/out)
        P[i, start:end] = 1.0 / float(end - start)
    return P


def bilinear_matrix(in_size: int, out_size: int) -> np.ndarray:
    """Matrix reproducing F.interpolate(mode='bilinear', align_corners=False) per axis."""
    U = np.zeros((out_size, in_size), dtype=np.float32)
    scale = in_size / out_size
    for t in range(out_size):
        src = (t + 0.5) * scale - 0.5
        src = max(src, 0.0)
        i0 = min(int(np.floor(src)), in_size - 1)
        frac = src - i0
        i1 = min(i0 + 1, in_size - 1)
        U[t, i0] += 1.0 - frac
        U[t, i1] += frac
    return U


def make_ppm_operators(H: int, W: int, S: int, bins, c_out: int):
    """One-time setup: pool/upsample operators and the block-diagonal level mask.

    Returns:
      poolT_all: (H*W, sumBB)          bf16  [PoolT_level0 | PoolT_level1 | ...]
      upT_all:   (sumBB, S*S)          bf16  stacked per-level UpT along the BB axis
      mask:      (L*c_out, sumBB)      f32   1 where a pooled column belongs to that
                                             row's pyramid level, else 0
      bb_sizes:  tuple of per-level bin*bin sizes (static Python ints)
    """
    poolT_list, upT_list, bb_sizes = [], [], []
    for b in bins:
        pool2d = np.kron(adaptive_pool_matrix(H, b), adaptive_pool_matrix(W, b))  # (b*b, H*W)
        up2d = np.kron(bilinear_matrix(b, S), bilinear_matrix(b, S))              # (S*S, b*b)
        poolT_list.append(pool2d.T)   # (H*W, b*b)
        upT_list.append(up2d.T)       # (b*b, S*S)
        bb_sizes.append(b * b)
    poolT_all = jnp.asarray(np.concatenate(poolT_list, axis=1)).astype(jnp.bfloat16)
    upT_all = jnp.asarray(np.concatenate(upT_list, axis=0)).astype(jnp.bfloat16)

    L = len(bins)
    sumBB = int(sum(bb_sizes))
    mask = np.zeros((L * c_out, sumBB), dtype=np.float32)
    off = 0
    for l, bb in enumerate(bb_sizes):
        mask[l * c_out:(l + 1) * c_out, off:off + bb] = 1.0
        off += bb
    return poolT_all, upT_all, jnp.asarray(mask), tuple(bb_sizes)


def make_ppm_params(key, in_dim: int, bins):
    """Deterministic parameters matching the PyTorch module's shapes.

    BN (inference form) scale is folded into the 1x1 conv weight; only the additive
    shift is kept.  Per-level weights are stacked row-wise for the fused kernel.
    Returns:
      w_all:     (L*c_out, in_dim)  bf16
      shift_all: (L*c_out, 1)       f32
    """
    num_level = len(bins)
    c_out = in_dim // num_level
    eps = 1e-5
    w_list, shift_list = [], []
    for li in range(num_level):
        wkey = jax.random.fold_in(key, li + 1)
        w = jax.random.normal(wkey, (c_out, in_dim), dtype=jnp.float32) * 0.1   # Conv2d 1x1, no bias
        gamma = 1.0 + 0.1 * jnp.arange(c_out, dtype=jnp.float32)                # BN weight
        beta = 0.05 * jnp.arange(c_out, dtype=jnp.float32)                      # BN bias
        rmean = 0.01 * jnp.arange(c_out, dtype=jnp.float32)                     # BN running_mean
        rvar = 1.0 + 0.02 * jnp.arange(c_out, dtype=jnp.float32)                # BN running_var
        inv_std = 1.0 / jnp.sqrt(rvar + eps)
        scale = gamma * inv_std
        shift = beta - rmean * scale
        w_list.append(w * scale[:, None])          # exact per-out-channel fold
        shift_list.append(shift)
    w_all = jnp.concatenate(w_list, axis=0).astype(jnp.bfloat16)     # (L*c_out, C)
    shift_all = jnp.concatenate(shift_list, axis=0).reshape(-1, 1)   # (L*c_out, 1) f32
    return w_all, shift_all


# ----------------------------- Pallas kernel ---------------------------------

def ppm_fused_kernel(x_ref, poolT_ref, w_ref, shift_ref, mask_ref, upT_ref,
                     o_ref, acc_ref, *, C, tc):
    # x_ref:     (1, tc, HW)            f32   channel tile of the current batch element
    # poolT_ref: (HW, sumBB)            bf16  concatenated adaptive-avg-pool operators (T)
    # w_ref:     (sum_cout, C)          bf16  stacked, BN-scale-folded 1x1 conv weights
    # shift_ref: (sum_cout, 1)          f32   folded BN shift
    # mask_ref:  (sum_cout, sumBB)      f32   block-diagonal level mask
    # upT_ref:   (sumBB, SS)            bf16  stacked bilinear upsample operators (T)
    # o_ref:     (1, C + sum_cout, SS)        fused output: [x ; pyramid levels]
    # acc_ref:   (C, sumBB)             f32   pooled features scratch (VMEM)
    k = pl.program_id(1)
    row0 = pl.multiple_of(k * tc, tc)

    x_blk = x_ref[0]                                           # (tc, HW) f32

    # Fused channel concat: identity pass-through of this channel tile (exact f32 copy
    # when out_dtype is f32).  Static lane range, aligned second-minor dynamic offset.
    o_ref[0, pl.ds(row0, tc), :] = x_blk.astype(o_ref.dtype)

    # Pool BEFORE the 1x1 conv (exact by matmul associativity): one pooling matmul
    # serves every pyramid level.  In-kernel bf16 cast of x (no wrapper cast pass).
    acc_ref[pl.ds(row0, tc), :] = jnp.dot(
        x_blk.astype(jnp.bfloat16), poolT_ref[...],
        preferred_element_type=jnp.float32)                    # (tc, sumBB) f32

    # Epilogue on the last channel tile: stacked conv + BN shift + ReLU + level mask,
    # then ONE upsample matmul and ONE lane-dense store of all pyramid rows.
    @pl.when(k == pl.num_programs(1) - 1)
    def _():
        pooled_bf = acc_ref[...].astype(jnp.bfloat16)          # (C, sumBB)
        z = jnp.dot(w_ref[...], pooled_bf,
                    preferred_element_type=jnp.float32)        # (sum_cout, sumBB)
        a = jnp.maximum(z + shift_ref[...], 0.0) * mask_ref[...]   # f32 VPU (v5e-safe)
        y = jnp.dot(a.astype(jnp.bfloat16), upT_ref[...],
                    preferred_element_type=jnp.float32)        # (sum_cout, SS)
        o_ref[0, C:, :] = y.astype(o_ref.dtype)


def ppm_fused_pallas(x_cm, poolT, w_all, shift_all, mask, upT, *, tc, out_dtype):
    N, C, HW = x_cm.shape
    sumBB, SS = upT.shape
    sum_cout = w_all.shape[0]
    assert C % tc == 0 and tc % 8 == 0, (C, tc)
    nkc = C // tc

    kernel = functools.partial(ppm_fused_kernel, C=C, tc=tc)
    return pl.pallas_call(
        kernel,
        out_shape=jax.ShapeDtypeStruct((N, C + sum_cout, SS), out_dtype),
        grid=(N, nkc),
        in_specs=[
            pl.BlockSpec((1, tc, HW), lambda n, k: (n, k, 0)),        # x: streamed by channel tile
            pl.BlockSpec((HW, sumBB), lambda n, k: (0, 0)),           # poolT: grid-invariant
            pl.BlockSpec((sum_cout, C), lambda n, k: (0, 0)),         # w_all: grid-invariant
            pl.BlockSpec((sum_cout, 1), lambda n, k: (0, 0)),         # shift: grid-invariant
            pl.BlockSpec((sum_cout, sumBB), lambda n, k: (0, 0)),     # mask: grid-invariant
            pl.BlockSpec((sumBB, SS), lambda n, k: (0, 0)),           # upT: grid-invariant
        ],
        out_specs=pl.BlockSpec((1, C + sum_cout, SS), lambda n, k: (n, 0, 0)),
        scratch_shapes=[pltpu.VMEM((C, sumBB), jnp.float32)],
        compiler_params=pltpu.CompilerParams(
            dimension_semantics=("parallel", "arbitrary"),
            vmem_limit_bytes=56 * 1024 * 1024),
    )(x_cm, poolT, w_all, shift_all, mask, upT)


# ----------------------------- PPM forward -----------------------------------

def ppm_forward(x, int_size, bins, params, operators, use_pallas=True, tc=None,
                out_dtype=None):
    N, C, H, W = x.shape
    L = len(bins)
    assert C % L == 0
    S = int_size
    # torch.cat([x, upsampled levels], dim=1) is only valid when spatial sizes match.
    assert S == H and S == W, "channel concat requires int_size == H == W"

    poolT, upT, mask, _bb_sizes = operators
    w_all, shift_all = params
    sum_cout = w_all.shape[0]
    out_dtype = x.dtype if out_dtype is None else out_dtype
    if tc is None:
        tc = min(C, 256)

    # glue: NCHW -> (N, C, H*W); pure reshape, no transpose, no dtype cast
    # (the bf16 cast for the MXU happens inside the kernel).
    x_cm = x.reshape(N, C, H * W)

    if use_pallas:
        out_flat = ppm_fused_pallas(x_cm, poolT, w_all, shift_all, mask, upT,
                                    tc=tc, out_dtype=out_dtype)   # (N, C+sum_cout, S*S)
    else:
        # pure-JAX reference of the identical math (same dtypes / op order)
        pooled = jnp.einsum('nch,hb->ncb', x_cm.astype(jnp.bfloat16), poolT,
                            preferred_element_type=jnp.float32)
        z = jnp.einsum('oc,ncb->nob', w_all, pooled.astype(jnp.bfloat16),
                       preferred_element_type=jnp.float32)
        a = jnp.maximum(z + shift_all[None], 0.0) * mask[None]
        y = jnp.einsum('nob,bs->nos', a.astype(jnp.bfloat16), upT,
                       preferred_element_type=jnp.float32)
        out_flat = jnp.concatenate([x_cm.astype(out_dtype), y.astype(out_dtype)], axis=1)

    # channel-major already: pure reshape (fused concat done inside the kernel).
    return out_flat.reshape(N, C + sum_cout, S, S)


# ----------------------------- main -------------------------------------------

if __name__ == "__main__":
    key = jax.random.PRNGKey(0)
    N, C, H, W = 2, 16, 16, 16
    int_size = 16            # must equal (H, W) so the channel concat is valid
    bins = (1, 2, 3, 6)
    c_out = C // len(bins)

    xkey, pkey = jax.random.split(key)
    x = jax.random.normal(xkey, (N, C, H, W), dtype=jnp.float32)
    params = make_ppm_params(pkey, C, bins)
    operators = make_ppm_operators(H, W, int_size, bins, c_out)   # built once, not per forward

    # tc=8 -> two channel tiles per batch element, exercising the tiled/epilogue path.
    out = ppm_forward(x, int_size, bins, params, operators, use_pallas=True, tc=8)
    out = jax.block_until_ready(out)

    # sanity check against a pure-JAX implementation of the identical math
    ref = jax.block_until_ready(
        ppm_forward(x, int_size, bins, params, operators, use_pallas=False))
    assert out.shape == (N, C + len(bins) * c_out, int_size, int_size), out.shape
    np.testing.assert_allclose(np.asarray(out), np.asarray(ref), rtol=5e-3, atol=5e-3)

    print("KERNEL_OK")
</pallas_src>

<mosaic_0001>
module attributes {stable_mosaic.version = 11 : i64} {
  func.func @ppm_fused_kernel(%arg0: i32, %arg1: i32, %arg2: memref<1x8x256xf32, #tpu.memory_space<vmem>>, %arg3: memref<256x50xbf16, #tpu.memory_space<vmem>>, %arg4: memref<16x16xbf16, #tpu.memory_space<vmem>>, %arg5: memref<16x1xf32, #tpu.memory_space<vmem>>, %arg6: memref<16x50xf32, #tpu.memory_space<vmem>>, %arg7: memref<50x256xbf16, #tpu.memory_space<vmem>>, %arg8: memref<1x32x256xf32, #tpu.memory_space<vmem>>, %arg9: memref<16x50xf32, #tpu.memory_space<vmem>>) attributes {dimension_semantics = [#tpu.dimension_semantics<parallel>, #tpu.dimension_semantics<arbitrary>], iteration_bounds = array<i64: 2, 2>, scalar_prefetch = 0 : i64, scratch_operands = 1 : i64, tpu.core_type = #tpu.core_type<tc>, window_params = [{transform_indices = @transform_0, window_bounds = array<i64: 1, 8, 256>}, {pipeline_mode = #tpu.pipeline_mode<synchronous>, transform_indices = @transform_1, window_bounds = array<i64: 256, 50>}, {pipeline_mode = #tpu.pipeline_mode<synchronous>, transform_indices = @transform_2, window_bounds = array<i64: 16, 16>}, {pipeline_mode = #tpu.pipeline_mode<synchronous>, transform_indices = @transform_3, window_bounds = array<i64: 16, 1>}, {pipeline_mode = #tpu.pipeline_mode<synchronous>, transform_indices = @transform_4, window_bounds = array<i64: 16, 50>}, {pipeline_mode = #tpu.pipeline_mode<synchronous>, transform_indices = @transform_5, window_bounds = array<i64: 50, 256>}, {transform_indices = @transform_6, window_bounds = array<i64: 1, 32, 256>}]} {
    %c8_i32 = arith.constant 8 : i32
    %0 = arith.muli %arg1, %c8_i32 : i32
    %1 = tpu.assume_multiple %0, 8 : i32
    %c0 = arith.constant 0 : index
    %c0_0 = arith.constant 0 : index
    %c0_1 = arith.constant 0 : index
    %2 = vector.load %arg2[%c0, %c0_0, %c0_1] : memref<1x8x256xf32, #tpu.memory_space<vmem>>, vector<1x8x256xf32>
    %3 = vector.shape_cast %2 : vector<1x8x256xf32> to vector<8x256xf32>
    %c0_2 = arith.constant 0 : index
    %4 = arith.index_cast %1 : i32 to index
    %c0_3 = arith.constant 0 : index
    %5 = vector.load %arg8[%c0_2, %4, %c0_3] : memref<1x32x256xf32, #tpu.memory_space<vmem>>, vector<1x8x256xf32>
    %6 = vector.shape_cast %5 : vector<1x8x256xf32> to vector<8x256xf32>
    %7 = vector.shape_cast %3 : vector<8x256xf32> to vector<1x8x256xf32>
    tpu.vector_store %arg8[%c0_2, %4, %c0_3], %7 {strides = array<i32>} : memref<1x32x256xf32, #tpu.memory_space<vmem>>, vector<1x8x256xf32>,
    %8 = arith.truncf %3 : vector<8x256xf32> to vector<8x256xbf16>
    %c0_4 = arith.constant 0 : index
    %c0_5 = arith.constant 0 : index
    %9 = vector.load %arg3[%c0_4, %c0_5] : memref<256x50xbf16, #tpu.memory_space<vmem>>, vector<256x50xbf16>
    %cst = arith.constant dense<0.000000e+00> : vector<8x50xf32>
    %10 = tpu.matmul %8, %9, %cst {dimension_numbers = #tpu.dot_dimension_numbers<[1], [0], [0], [1], [0, 0, 1, 1], [], []>} : vector<8x256xbf16>, vector<256x50xbf16>, vector<8x50xf32> -> vector<8x50xf32>
    %11 = arith.index_cast %1 : i32 to index
    %c0_6 = arith.constant 0 : index
    %12 = vector.load %arg9[%11, %c0_6] : memref<16x50xf32, #tpu.memory_space<vmem>>, vector<8x50xf32>
    tpu.vector_store %arg9[%11, %c0_6], %10 {strides = array<i32>} : memref<16x50xf32, #tpu.memory_space<vmem>>, vector<8x50xf32>,
    %c1_i32 = arith.constant 1 : i32
    %13 = arith.cmpi eq, %arg1, %c1_i32 : i32
    %14 = arith.extui %13 : i1 to i32
    %c0_i32 = arith.constant 0 : i32
    %15 = arith.cmpi ne, %14, %c0_i32 : i32
    scf.if %15 {
      %c0_7 = arith.constant 0 : index
      %c0_8 = arith.constant 0 : index
      %16 = vector.load %arg9[%c0_7, %c0_8] : memref<16x50xf32, #tpu.memory_space<vmem>>, vector<16x50xf32>
      %17 = arith.truncf %16 : vector<16x50xf32> to vector<16x50xbf16>
      %c0_9 = arith.constant 0 : index
      %c0_10 = arith.constant 0 : index
      %18 = vector.load %arg4[%c0_9, %c0_10] : memref<16x16xbf16, #tpu.memory_space<vmem>>, vector<16x16xbf16>
      %cst_11 = arith.constant dense<0.000000e+00> : vector<16x50xf32>
      %19 = tpu.matmul %18, %17, %cst_11 {dimension_numbers = #tpu.dot_dimension_numbers<[1], [0], [0], [1], [0, 0, 1, 1], [], []>} : vector<16x16xbf16>, vector<16x50xbf16>, vector<16x50xf32> -> vector<16x50xf32>
      %c0_12 = arith.constant 0 : index
      %c0_13 = arith.constant 0 : index
      %20 = vector.load %arg5[%c0_12, %c0_13] : memref<16x1xf32, #tpu.memory_space<vmem>>, vector<16x1xf32>
      %21 = vector.broadcast %20 : vector<16x1xf32> to vector<16x50xf32>
      %22 = arith.addf %19, %21 : vector<16x50xf32>
      %cst_14 = arith.constant 0.000000e+00 : f32
      %23 = vector.broadcast %cst_14 : f32 to vector<16x50xf32>
      %24 = arith.maximumf %22, %23 : vector<16x50xf32>
      %c0_15 = arith.constant 0 : index
      %c0_16 = arith.constant 0 : index
      %25 = vector.load %arg6[%c0_15, %c0_16] : memref<16x50xf32, #tpu.memory_space<vmem>>, vector<16x50xf32>
      %26 = arith.mulf %24, %25 : vector<16x50xf32>
      %27 = arith.truncf %26 : vector<16x50xf32> to vector<16x50xbf16>
      %c0_17 = arith.constant 0 : index
      %c0_18 = arith.constant 0 : index
      %28 = vector.load %arg7[%c0_17, %c0_18] : memref<50x256xbf16, #tpu.memory_space<vmem>>, vector<50x256xbf16>
      %cst_19 = arith.constant dense<0.000000e+00> : vector<16x256xf32>
      %29 = tpu.matmul %27, %28, %cst_19 {dimension_numbers = #tpu.dot_dimension_numbers<[1], [0], [0], [1], [0, 0, 1, 1], [], []>} : vector<16x50xbf16>, vector<50x256xbf16>, vector<16x256xf32> -> vector<16x256xf32>
      %c0_20 = arith.constant 0 : index
      %c16 = arith.constant 16 : index
      %c0_21 = arith.constant 0 : index
      %30 = vector.load %arg8[%c0_20, %c16, %c0_21] : memref<1x32x256xf32, #tpu.memory_space<vmem>>, vector<1x16x256xf32>
      %31 = vector.shape_cast %30 : vector<1x16x256xf32> to vector<16x256xf32>
      %32 = vector.shape_cast %29 : vector<16x256xf32> to vector<1x16x256xf32>
      tpu.vector_store %arg8[%c0_20, %c16, %c0_21], %32 {strides = array<i32>} : memref<1x32x256xf32, #tpu.memory_space<vmem>>, vector<1x16x256xf32>,
    } else {
    }
    return
  }
  func.func @transform_0(%arg0: i32, %arg1: i32) -> (i32, i32, i32) {
    %c0_i32 = arith.constant 0 : i32
    %c0_i32_0 = arith.constant 0 : i32
    return %arg0, %arg1, %c0_i32 : i32, i32, i32
  }
  func.func @transform_1(%arg0: i32, %arg1: i32) -> (i32, i32) {
    %c0_i32 = arith.constant 0 : i32
    %c0_i32_0 = arith.constant 0 : i32
    %c0_i32_1 = arith.constant 0 : i32
    return %c0_i32, %c0_i32_0 : i32, i32
  }
  func.func @transform_2(%arg0: i32, %arg1: i32) -> (i32, i32) {
    %c0_i32 = arith.constant 0 : i32
    %c0_i32_0 = arith.constant 0 : i32
    %c0_i32_1 = arith.constant 0 : i32
    return %c0_i32, %c0_i32_0 : i32, i32
  }
  func.func @transform_3(%arg0: i32, %arg1: i32) -> (i32, i32) {
    %c0_i32 = arith.constant 0 : i32
    %c0_i32_0 = arith.constant 0 : i32
    %c0_i32_1 = arith.constant 0 : i32
    return %c0_i32, %c0_i32_0 : i32, i32
  }
  func.func @transform_4(%arg0: i32, %arg1: i32) -> (i32, i32) {
    %c0_i32 = arith.constant 0 : i32
    %c0_i32_0 = arith.constant 0 : i32
    %c0_i32_1 = arith.constant 0 : i32
    return %c0_i32, %c0_i32_0 : i32, i32
  }
  func.func @transform_5(%arg0: i32, %arg1: i32) -> (i32, i32) {
    %c0_i32 = arith.constant 0 : i32
    %c0_i32_0 = arith.constant 0 : i32
    %c0_i32_1 = arith.constant 0 : i32
    return %c0_i32, %c0_i32_0 : i32, i32
  }
  func.func @transform_6(%arg0: i32, %arg1: i32) -> (i32, i32, i32) {
    %c0_i32 = arith.constant 0 : i32
    %c0_i32_0 = arith.constant 0 : i32
    %c0_i32_1 = arith.constant 0 : i32
    return %arg0, %c0_i32, %c0_i32_0 : i32, i32, i32
  }
}

</mosaic_0001>

<llo_original>
// kernel: tpu_custom_call.1
$region0: #{tpu_custom_call.1}
  #allocation0 [shape = 'u32[]', space=smem, size = 0x4, offset = 0x4, fixed_abs, tag = 'smem constant byte address 0x4 - core index']
  #allocation1 [shape = 'u32[144,128]{1,0:T(1,128)}', space=vmem, size = 0x12000, scoped, tag = 'internal scratch']
  #allocation2 [shape = 'f32[16,50]{1,0:T(8,128)}', space=vmem, size = 0x2000, scoped, tag = 'scratch operand']
  %s0 = inlined_call_operand.vmem [shape: f32[2,16,256], index: 0, kind: input, shape index: {}]
  %s1 = inlined_call_operand.vmem [shape: bf16[256,50], index: 1, kind: input, shape index: {}]
  %s2 = inlined_call_operand.vmem [shape: bf16[16,16], index: 2, kind: input, shape index: {}]
  %s3 = inlined_call_operand.vmem [shape: f32[16,1], index: 3, kind: input, shape index: {}]
  %s4 = inlined_call_operand.vmem [shape: f32[16,50], index: 4, kind: input, shape index: {}]
  %s5 = inlined_call_operand.vmem [shape: bf16[50,256], index: 5, kind: input, shape index: {}]
  %s6 = inlined_call_operand.hbm [shape: f32[2,32,256], index: 6, kind: output, shape index: {}]
  %s7 = sld [smem:[#allocation0]]
  $region61: #{tpu_custom_call.1} parent=0
    _
  %s9 = ssub.s32 1, %s7
  %s10 = scalar_select 0, %s9, %s7
  $region1: #{tpu_custom_call.1} parent=0
    #allocation3 [shape = 'u8[65536]{0}', space=vmem, size = 0x10000, scoped, tag = 'output window, operand 0']
    #allocation4 [shape = 's32[2]{0}', space=sflag, size = 0x8, scoped, tag = 'scoped memory for tpu_custom_call.1']
    %11 = vsyncpa [#allocation4], 0
    %s12 = scalar_lea.sflag [#allocation4], 1
    %13 = vsyncpa %s12, 0
    loop: start=0, step=1, limit=6
    $region2: #{tpu_custom_call.1} parent=1 // loop_pre_header
      _
    $region3: #{tpu_custom_call.1} parent=1 // loop_header
      %s15 = sphi 0, %s19
      %p16 = scmp.ge.s32.totalorder %s15, 6
      %s22 = sphi 0, %s34
      %s23 = sphi 0, %s30
      %s24 = sphi 0, %s22
      %s25 = sphi 0, %s23
      %s26 = sphi 0, %s24
      %s27 = sphi 0, %s25
      %s39 = sphi 0, %s41
      %s42 = sphi 0, %s39
      %s43 = sphi 0, %s42
      %s59 = sphi 0, %s43
      %s63 = sphi 0, %s63
      %s65 = sphi 0, %s63
      %s66 = sphi 0, %s65
      %s80 = sphi 0, %s66
      %s84 = sphi 0, %s84
      %s86 = sphi 0, %s84
      %s87 = sphi 0, %s86
      %s101 = sphi 0, %s87
      %s105 = sphi 0, %s105
      %s107 = sphi 0, %s105
      %s108 = sphi 0, %s107
      %s122 = sphi 0, %s108
      %s126 = sphi 0, %s126
      %s128 = sphi 0, %s126
      %s129 = sphi 0, %s128
      %s143 = sphi 0, %s129
      %s147 = sphi 0, %s147
      %s149 = sphi 0, %s147
      %s150 = sphi 0, %s149
      %s164 = sphi 0, %s150
      %s170 = sphi 0, %s172
      %s173 = sphi 0, %s170
      %s174 = sphi 0, %s173
      %s190 = sphi 0, %s174
    $region4: #{tpu_custom_call.1} parent=1 // loop_header_branch
      %18 = sbr.rel (%p16) target = $region8
    $region5: #{tpu_custom_call.1} parent=1 // loop_body
      %s20 = ssub.s32 %s15, 1
      %s21 = ssub.s32 %s15, 2
      %s28 = sadd.s32 1, %s23
      %p29 = scmp.ge.s32.totalorder %s28, 2
      %s30 = scalar_select %p29, 0, %s28
      %s31 = sadd.s32 1, %s22
      %s32 = scalar_select %p29, %s31, %s22
      %p33 = scmp.ge.s32.totalorder %s32, 2
      %s34 = scalar_select %p33, 0, %s32
      %s35 = ssub.s32 %s22, %s34
      %s36 = ssub.s32 %s23, %s30
      %s37 = sor.u32 %s35, %s36
      %p38 = scmp.eq.s32.totalorder %s37, 0
      %s40 = sadd.s32 %s39, 1
      %s41 = scalar_select %p38, %s39, %s40
      %p44 = pneg %p38
      %p45 = scmp.eq.s32.totalorder %s15, 3
      %p46 = por %p44, %p45
      %p47 = scmp.ne.s32.totalorder %s39, %s42
      %p48 = scmp.eq.s32.totalorder %s15, 0
      %p49 = por %p47, %p48
      %p50 = scmp.ne.s32.totalorder %s39, %s42
      %p51 = scmp.eq.s32.totalorder %s20, 3
      %p52 = por %p50, %p51
      %p53 = scmp.ne.s32.totalorder %s42, %s43
      %p54 = scmp.eq.s32.totalorder %s20, 0
      %p55 = por %p53, %p54
      %p56 = scmp.ne.s32.totalorder %s42, %s43
      %p57 = scmp.eq.s32.totalorder %s21, 3
      %p58 = por %p56, %p57
      %p60 = scmp.ne.s32.totalorder %s43, %s59
      %p61 = scmp.eq.s32.totalorder %s21, 0
      %p62 = por %p60, %p61
      %s64 = sadd.s32 %s63, 1
      %p67 = scmp.eq.s32.totalorder %s15, 3
      %p68 = scmp.ne.s32.totalorder %s63, %s65
      %p69 = scmp.eq.s32.totalorder %s15, 0
      %p70 = por %p68, %p69
      %p71 = scmp.ne.s32.totalorder %s63, %s65
      %p72 = scmp.eq.s32.totalorder %s20, 3
      %p73 = por %p71, %p72
      %p74 = scmp.ne.s32.totalorder %s65, %s66
      %p75 = scmp.eq.s32.totalorder %s20, 0
      %p76 = por %p74, %p75
      %p77 = scmp.ne.s32.totalorder %s65, %s66
      %p78 = scmp.eq.s32.totalorder %s21, 3
      %p79 = por %p77, %p78
      %p81 = scmp.ne.s32.totalorder %s66, %s80
      %p82 = scmp.eq.s32.totalorder %s21, 0
      %p83 = por %p81, %p82
      %s85 = sadd.s32 %s84, 1
      %p88 = scmp.eq.s32.totalorder %s15, 3
      %p89 = scmp.ne.s32.totalorder %s84, %s86
      %p90 = scmp.eq.s32.totalorder %s15, 0
      %p91 = por %p89, %p90
      %p92 = scmp.ne.s32.totalorder %s84, %s86
      %p93 = scmp.eq.s32.totalorder %s20, 3
      %p94 = por %p92, %p93
      %p95 = scmp.ne.s32.totalorder %s86, %s87
      %p96 = scmp.eq.s32.totalorder %s20, 0
      %p97 = por %p95, %p96
      %p98 = scmp.ne.s32.totalorder %s86, %s87
      %p99 = scmp.eq.s32.totalorder %s21, 3
      %p100 = por %p98, %p99
      %p102 = scmp.ne.s32.totalorder %s87, %s101
      %p103 = scmp.eq.s32.totalorder %s21, 0
      %p104 = por %p102, %p103
      %s106 = sadd.s32 %s105, 1
      %p109 = scmp.eq.s32.totalorder %s15, 3
      %p110 = scmp.ne.s32.totalorder %s105, %s107
      %p111 = scmp.eq.s32.totalorder %s15, 0
      %p112 = por %p110, %p111
      %p113 = scmp.ne.s32.totalorder %s105, %s107
      %p114 = scmp.eq.s32.totalorder %s20, 3
      %p115 = por %p113, %p114
      %p116 = scmp.ne.s32.totalorder %s107, %s108
      %p117 = scmp.eq.s32.totalorder %s20, 0
      %p118 = por %p116, %p117
      %p119 = scmp.ne.s32.totalorder %s107, %s108
      %p120 = scmp.eq.s32.totalorder %s21, 3
      %p121 = por %p119, %p120
      %p123 = scmp.ne.s32.totalorder %s108, %s122
      %p124 = scmp.eq.s32.totalorder %s21, 0
      %p125 = por %p123, %p124
      %s127 = sadd.s32 %s126, 1
      %p130 = scmp.eq.s32.totalorder %s15, 3
      %p131 = scmp.ne.s32.totalorder %s126, %s128
      %p132 = scmp.eq.s32.totalorder %s15, 0
      %p133 = por %p131, %p132
      %p134 = scmp.ne.s32.totalorder %s126, %s128
      %p135 = scmp.eq.s32.totalorder %s20, 3
      %p136 = por %p134, %p135
      %p137 = scmp.ne.s32.totalorder %s128, %s129
      %p138 = scmp.eq.s32.totalorder %s20, 0
      %p139 = por %p137, %p138
      %p140 = scmp.ne.s32.totalorder %s128, %s129
      %p141 = scmp.eq.s32.totalorder %s21, 3
      %p142 = por %p140, %p141
      %p144 = scmp.ne.s32.totalorder %s129, %s143
      %p145 = scmp.eq.s32.totalorder %s21, 0
      %p146 = por %p144, %p145
      %s148 = sadd.s32 %s147, 1
      %p151 = scmp.eq.s32.totalorder %s15, 3
      %p152 = scmp.ne.s32.totalorder %s147, %s149
      %p153 = scmp.eq.s32.totalorder %s15, 0
      %p154 = por %p152, %p153
      %p155 = scmp.ne.s32.totalorder %s147, %s149
      %p156 = scmp.eq.s32.totalorder %s20, 3
      %p157 = por %p155, %p156
      %p158 = scmp.ne.s32.totalorder %s149, %s150
      %p159 = scmp.eq.s32.totalorder %s20, 0
      %p160 = por %p158, %p159
      %p161 = scmp.ne.s32.totalorder %s149, %s150
      %p162 = scmp.eq.s32.totalorder %s21, 3
      %p163 = por %p161, %p162
      %p165 = scmp.ne.s32.totalorder %s150, %s164
      %p166 = scmp.eq.s32.totalorder %s21, 0
      %p167 = por %p165, %p166
      %s168 = ssub.s32 %s22, %s34
      %p169 = scmp.eq.s32.totalorder %s168, 0
      %s171 = sadd.s32 %s170, 1
      %s172 = scalar_select %p169, %s170, %s171
      %p175 = pneg %p169
      %p176 = scmp.eq.s32.totalorder %s15, 3
      %p177 = por %p175, %p176
      %p178 = scmp.ne.s32.totalorder %s170, %s173
      %p179 = scmp.eq.s32.totalorder %s15, 0
      %p180 = por %p178, %p179
      %p181 = scmp.ne.s32.totalorder %s170, %s173
      %p182 = scmp.eq.s32.totalorder %s20, 3
      %p183 = por %p181, %p182
      %p184 = scmp.ne.s32.totalorder %s173, %s174
      %p185 = scmp.eq.s32.totalorder %s20, 0
      %p186 = por %p184, %p185
      %p187 = scmp.ne.s32.totalorder %s173, %s174
      %p188 = scmp.eq.s32.totalorder %s21, 3
      %p189 = por %p187, %p188
      %p191 = scmp.ne.s32.totalorder %s174, %s190
      %p192 = scmp.eq.s32.totalorder %s21, 0
      %p193 = por %p191, %p192
      %p194 = scmp.le.s32.totalorder 1, %s15
      %p195 = scmp.lt.s32.totalorder %s15, 5
      %p196 = pnand %p194, %p195
      %p197 = pneg %p196
      // Predicated region
      $region9: #{tpu_custom_call.1} parent=5 // pred_check
        _
      $region10: #{tpu_custom_call.1} parent=5 // pred_check_branch
        %199 = sbr.rel (%p196) target = $region12
      $region11: #{tpu_custom_call.1} parent=5 // pred_region
        %s200 = ssub.s32 %s15, 1
        // Predicated region
        $region13: #{tpu_custom_call.1} parent=11 // pred_check
          %p201 = pneg %p76
        $region14: #{tpu_custom_call.1} parent=11 // pred_check_branch
          %203 = sbr.rel (%p201) target = $region16
        $region15: #{tpu_custom_call.1} parent=11 // pred_region
          _
        $region16: #{tpu_custom_call.1} parent=11 // pred_fallthru
          _
        // Predicated region
        $region17: #{tpu_custom_call.1} parent=11 // pred_check
          %p204 = pneg %p97
        $region18: #{tpu_custom_call.1} parent=11 // pred_check_branch
          %206 = sbr.rel (%p204) target = $region20
        $region19: #{tpu_custom_call.1} parent=11 // pred_region
          _
        $region20: #{tpu_custom_call.1} parent=11 // pred_fallthru
          _
        // Predicated region
        $region21: #{tpu_custom_call.1} parent=11 // pred_check
          %p207 = pneg %p118
        $region22: #{tpu_custom_call.1} parent=11 // pred_check_branch
          %209 = sbr.rel (%p207) target = $region24
        $region23: #{tpu_custom_call.1} parent=11 // pred_region
          _
        $region24: #{tpu_custom_call.1} parent=11 // pred_fallthru
          _
        // Predicated region
        $region25: #{tpu_custom_call.1} parent=11 // pred_check
          %p210 = pneg %p139
        $region26: #{tpu_custom_call.1} parent=11 // pred_check_branch
          %212 = sbr.rel (%p210) target = $region28
        $region27: #{tpu_custom_call.1} parent=11 // pred_region
          _
        $region28: #{tpu_custom_call.1} parent=11 // pred_fallthru
          _
        // Predicated region
        $region29: #{tpu_custom_call.1} parent=11 // pred_check
          %p213 = pneg %p160
        $region30: #{tpu_custom_call.1} parent=11 // pred_check_branch
          %215 = sbr.rel (%p213) target = $region32
        $region31: #{tpu_custom_call.1} parent=11 // pred_region
          _
        $region32: #{tpu_custom_call.1} parent=11 // pred_fallthru
          _
      $region12: #{tpu_custom_call.1} parent=5 // pred_fallthru
        _
      %p216 = scmp.lt.s32.totalorder %s15, 4
      // Predicated region
      $region33: #{tpu_custom_call.1} parent=5 // pred_check
        %p217 = pneg %p216
      $region34: #{tpu_custom_call.1} parent=5 // pred_check_branch
        %219 = sbr.rel (%p217) target = $region36
      $region35: #{tpu_custom_call.1} parent=5 // pred_region
        // Predicated region
        $region37: #{tpu_custom_call.1} parent=35 // pred_check
          %p220 = pneg %p49
        $region38: #{tpu_custom_call.1} parent=35 // pred_check_branch
          %222 = sbr.rel (%p220) target = $region40
        $region39: #{tpu_custom_call.1} parent=35 // pred_region
          %p223 = scmp.lt.s32.totalorder %s22, 1
          %s224 = scalar_select %p223, %s22, 1
          %p225 = scmp.lt.s32.totalorder %s23, 1
          %s226 = scalar_select %p225, %s23, 1
          %s227 = smul.addr %s226, 2
          %s228 = smul.addr %s224, 4
          %s229 = sadd.s32 %s227, %s228
          %s230 = smul.addr %s229, 8
          %s231 = scalar_lea.vmem %s0, %s230
        $region40: #{tpu_custom_call.1} parent=35 // pred_fallthru
          _
      $region36: #{tpu_custom_call.1} parent=5 // pred_fallthru
        _
      %p232 = scmp.le.s32.totalorder 1, %s15
      %p233 = scmp.lt.s32.totalorder %s15, 5
      %p234 = pnand %p232, %p233
      %p235 = pneg %p234
      // Predicated region
      $region41: #{tpu_custom_call.1} parent=5 // pred_check
        _
      $region42: #{tpu_custom_call.1} parent=5 // pred_check_branch
        %237 = sbr.rel (%p234) target = $region44
      $region43: #{tpu_custom_call.1} parent=5 // pred_region
        %s238 = ssub.s32 %s15, 1
        %p239 = scmp.lt.s32.totalorder %s24, 1
        %s240 = scalar_select %p239, %s24, 1
        %p241 = scmp.lt.s32.totalorder %s25, 1
        %s242 = scalar_select %p241, %s25, 1
        %s243 = smul.addr %s242, 2
        %s244 = smul.addr %s240, 4
        %s245 = sadd.s32 %s243, %s244
        %s246 = smul.addr %s245, 8
        %s247 = scalar_lea.vmem %s0, %s246
        %p248 = pneg %p55
        %p249 = pneg %p52
        %p250 = pneg %p76
        %p251 = pneg %p73
        %p252 = pneg %p97
        %p253 = pneg %p94
        %p254 = pneg %p118
        %p255 = pneg %p115
        %p256 = pneg %p139
        %p257 = pneg %p136
        %p258 = pneg %p160
        %p259 = pneg %p157
        %p260 = pneg %p186
        %p261 = pneg %p183
        %s262 = sand.u32 %s173, 1
        %s263 = scalar_lea.sflag [#allocation4], %s262
        %s264 = sand.u32 %s173, 1
        %s265 = smul.addr %s264, 64
        %s266 = scalar_lea.vmem [#allocation3], %s265
        %p267 = scmp.lt.s32.totalorder %s24, 1
        %s268 = scalar_select %p267, %s24, 1
        %p269 = scmp.lt.s32.totalorder %s25, 1
        %s270 = scalar_select %p269, %s25, 1
        %s271 = smul.addr %s270, 2
        %s272 = smul.addr %s268, 4
        %s273 = sadd.s32 %s271, %s272
        %s274 = smul.addr %s273, 8
        %s275 = scalar_lea.vmem %s0, %s274
        %s277 = smul.u32 %s25, 8
        %v278 = vld [vmem:[%s275] sm:$0xff]
        %v279 = vld [vmem:[%s275 + $0x8] sm:$0xff]
        %s280 = sshra.s32 %s277, 3
        %s281 = sand.u32 %s277, 7
        %s282 = smul.u32 %s280, 2
        %s283 = smul.addr %s282, 8
        %s284 = scalar_lea.vmem %s266, %s283 [#allocation3]
        %285 = vst [vmem:[%s284] sm:$0xff] %v278
        %286 = vst [vmem:[%s284 + $0x8] sm:$0xff] %v279
        %v287 = vpack.c.bf16 %v278, %v278
        %v288 = vpack.c.bf16 %v279, %v279
        %v289 = vld [vmem:[%s1] sm:$0xf]
        %v290 = vld [vmem:[%s1 + $0x4] sm:$0xf]
        %v291 = vld [vmem:[%s1 + $0x8] sm:$0xf]
        %v292 = vld [vmem:[%s1 + $0xc] sm:$0xf]
        %v293 = vld [vmem:[%s1 + $0x10] sm:$0xf]
        %v294 = vld [vmem:[%s1 + $0x14] sm:$0xf]
        %v295 = vld [vmem:[%s1 + $0x18] sm:$0xf]
        %v296 = vld [vmem:[%s1 + $0x1c] sm:$0xf]
        %v297 = vld [vmem:[%s1 + $0x20] sm:$0xf]
        %v298 = vld [vmem:[%s1 + $0x24] sm:$0xf]
        %v299 = vld [vmem:[%s1 + $0x28] sm:$0xf]
        %v300 = vld [vmem:[%s1 + $0x2c] sm:$0xf]
        %v301 = vld [vmem:[%s1 + $0x30] sm:$0xf]
        %v302 = vld [vmem:[%s1 + $0x34] sm:$0xf]
        %v303 = vld [vmem:[%s1 + $0x38] sm:$0xf]
        %v304 = vld [vmem:[%s1 + $0x3c] sm:$0xf]
        %v305 = vld [vmem:[%s1 + $0x40] sm:$0xf]
        %v306 = vld [vmem:[%s1 + $0x44] sm:$0xf]
        %v307 = vld [vmem:[%s1 + $0x48] sm:$0xf]
        %v308 = vld [vmem:[%s1 + $0x4c] sm:$0xf]
        %v309 = vld [vmem:[%s1 + $0x50] sm:$0xf]
        %v310 = vld [vmem:[%s1 + $0x54] sm:$0xf]
        %v311 = vld [vmem:[%s1 + $0x58] sm:$0xf]
        %v312 = vld [vmem:[%s1 + $0x5c] sm:$0xf]
        %v313 = vld [vmem:[%s1 + $0x60] sm:$0xf]
        %v314 = vld [vmem:[%s1 + $0x64] sm:$0xf]
        %v315 = vld [vmem:[%s1 + $0x68] sm:$0xf]
        %v316 = vld [vmem:[%s1 + $0x6c] sm:$0xf]
        %v317 = vld [vmem:[%s1 + $0x70] sm:$0xf]
        %v318 = vld [vmem:[%s1 + $0x74] sm:$0xf]
        %v319 = vld [vmem:[%s1 + $0x78] sm:$0xf]
        %v320 = vld [vmem:[%s1 + $0x7c] sm:$0xf]
        %v353 = vunpack.c.l.b16 %v289
        %v354 = vunpack.c.l.b16 %v290
        %v355 = vunpack.c.l.b16 %v291
        %v356 = vunpack.c.l.b16 %v292
        %v357 = vunpack.c.l.b16 %v293
        %v358 = vunpack.c.l.b16 %v294
        %v359 = vunpack.c.l.b16 %v295
        %v360 = vunpack.c.l.b16 %v296
        %v361 = vunpack.c.l.b16 %v297
        %v362 = vunpack.c.l.b16 %v298
        %v363 = vunpack.c.l.b16 %v299
        %v364 = vunpack.c.l.b16 %v300
        %v365 = vunpack.c.l.b16 %v301
        %v366 = vunpack.c.l.b16 %v302
        %v367 = vunpack.c.l.b16 %v303
        %v368 = vunpack.c.l.b16 %v304
        %v369 = vunpack.c.l.b16 %v305
        %v370 = vunpack.c.l.b16 %v306
        %v371 = vunpack.c.l.b16 %v307
        %v372 = vunpack.c.l.b16 %v308
        %v373 = vunpack.c.l.b16 %v309
        %v374 = vunpack.c.l.b16 %v310
        %v375 = vunpack.c.l.b16 %v311
        %v376 = vunpack.c.l.b16 %v312
        %v377 = vunpack.c.l.b16 %v313
        %v378 = vunpack.c.l.b16 %v314
        %v379 = vunpack.c.l.b16 %v315
        %v380 = vunpack.c.l.b16 %v316
        %v381 = vunpack.c.l.b16 %v317
        %v382 = vunpack.c.l.b16 %v318
        %v383 = vunpack.c.l.b16 %v319
        %v384 = vunpack.c.l.b16 %v320
        %v385 = vpack.c.b16 %v354, %v353
        %v386 = vpack.c.b16 %v356, %v355
        %v387 = vpack.c.b16 %v358, %v357
        %v388 = vpack.c.b16 %v360, %v359
        %v389 = vpack.c.b16 %v362, %v361
        %v390 = vpack.c.b16 %v364, %v363
        %v391 = vpack.c.b16 %v366, %v365
        %v392 = vpack.c.b16 %v368, %v367
        %v393 = vpack.c.b16 %v370, %v369
        %v394 = vpack.c.b16 %v372, %v371
        %v395 = vpack.c.b16 %v374, %v373
        %v396 = vpack.c.b16 %v376, %v375
        %v397 = vpack.c.b16 %v378, %v377
        %v398 = vpack.c.b16 %v380, %v379
        %v399 = vpack.c.b16 %v382, %v381
        %v400 = vpack.c.b16 %v384, %v383
        %417 = vmatprep.subr.bf16.mxu0 0
        %418 = vmatpush1.bf16.msra.mxu0 %v392
        %419 = vmatprep.subr.bf16.mxu0 0
        %420 = vmatpush1.bf16.msra.mxu0 %v391
        %421 = vmatprep.subr.bf16.mxu0 0
        %422 = vmatpush1.bf16.msra.mxu0 %v390
        %423 = vmatprep.subr.bf16.mxu0 0
        %424 = vmatpush1.bf16.msra.mxu0 %v389
        %425 = vmatprep.subr.bf16.mxu0 0
        %426 = vmatpush1.bf16.msra.mxu0 %v388
        %427 = vmatprep.subr.bf16.mxu0 0
        %428 = vmatpush1.bf16.msra.mxu0 %v387
        %429 = vmatprep.subr.bf16.mxu0 0
        %430 = vmatpush1.bf16.msra.mxu0 %v386
        %431 = vmatprep.subr.bf16.mxu0 0
        %432 = vmatpush1.bf16.msra.mxu0 %v385
        %433 = vmatprep.subr.bf16.mxu0 0
        %434 = vmatpush2.bf16.msra.mxu0 %v400
        %435 = vmatprep.subr.bf16.mxu0 0
        %436 = vmatpush2.bf16.msra.mxu0 %v399
        %437 = vmatprep.subr.bf16.mxu0 0
        %438 = vmatpush2.bf16.msra.mxu0 %v398
        %439 = vmatprep.subr.bf16.mxu0 0
        %440 = vmatpush2.bf16.msra.mxu0 %v397
        %441 = vmatprep.subr.bf16.mxu0 0
        %442 = vmatpush2.bf16.msra.mxu0 %v396
        %443 = vmatprep.subr.bf16.mxu0 0
        %444 = vmatpush2.bf16.msra.mxu0 %v395
        %445 = vmatprep.subr.bf16.mxu0 0
        %446 = vmatpush2.bf16.msra.mxu0 %v394
        %447 = vmatprep.subr.bf16.mxu0 0
        %448 = vmatpush2.bf16.msra.mxu0 %v393
        %449 = vmatprep.mubr.bf16.mxu0 %v288
        %450 = vmatmul.mubr.bf16.gmra.mxu0 %v287
        %v451 = vpop.f32.mrf.mxu0
        %v452 = vadd.f32 0.0, %v451
        %v453 = vpop.f32.mrf.mxu0
        %v454 = vpop.f32.mrf.mxu0
        %v455 = vpop.f32.mrf.mxu0
        %456 = vdwg.mxu0
        %s457 = scalar_lea.vmem [#allocation2], %s277
        %vm458 = vcmask 408576
        %459 = vst.msk [vmem:[%s457] sm:$0xff] %vm458, %v452
        %p460 = scmp.eq.s32.totalorder %s25, 1
        // Predicated region
        $region45: #{tpu_custom_call.1} parent=43 // pred_check
          %p461 = pneg %p460
        $region46: #{tpu_custom_call.1} parent=43 // pred_check_branch
          %463 = sbr.rel (%p461) target = $region48
        $region47: #{tpu_custom_call.1} parent=43 // pred_region
          %v464 = vld [vmem:[#allocation2] sm:$0xff]
          %v465 = vld [vmem:[#allocation2 + $0x8] sm:$0xff]
          %v466 = vpack.c.bf16 %v465, %v464
          %v467 = vld [vmem:[%s2] sm:$0xf]
          %v468 = vld [vmem:[%s2 + $0x4] sm:$0xf]
          %v469 = vld [vmem:[%s3] sm:$0xff]
          %v470 = vld [vmem:[%s3 + $0x8] sm:$0xff]
          %472 = vset.pattern.permute.xlu0 0
          %473 = vperm.xlu0 %472, %v469
          %v474 = vpop.permute.xlu0 %473
          %477 = vset.pattern.permute.xlu0 0
          %478 = vperm.xlu0 %477, %v470
          %v479 = vpop.permute.xlu0 %478
          %v483 = vunpack.c.l.b16 %v467
          %v484 = vunpack.c.l.b16 %v468
          %v485 = vpack.c.b16 %v484, %v483
          %vm486 = vcmask 130048
          %v488 = vsel %vm486, %v485, 0
          %490 = vmatprep.subr.bf16.mxu0 0
          %491 = vmatpush1.bf16.msra.mxu0 0
          %492 = vmatprep.subr.bf16.mxu0 0
          %493 = vmatpush1.bf16.msra.mxu0 0
          %494 = vmatprep.subr.bf16.mxu0 0
          %495 = vmatpush1.bf16.msra.mxu0 0
          %496 = vmatprep.subr.bf16.mxu0 0
          %497 = vmatpush1.bf16.msra.mxu0 0
          %498 = vmatprep.subr.bf16.mxu0 0
          %499 = vmatpush1.bf16.msra.mxu0 0
          %500 = vmatprep.subr.bf16.mxu0 0
          %501 = vmatpush1.bf16.msra.mxu0 0
          %502 = vmatprep.subr.bf16.mxu0 0
          %503 = vmatpush1.bf16.msra.mxu0 0
          %504 = vmatprep.subr.bf16.mxu0 0
          %505 = vmatpush1.bf16.msra.mxu0 %v466
          %506 = vmatprep.subr.bf16.mxu0 0
          %507 = vmatpush2.bf16.msra.mxu0 0
          %508 = vmatprep.subr.bf16.mxu0 0
          %509 = vmatpush2.bf16.msra.mxu0 0
          %510 = vmatprep.subr.bf16.mxu0 0
          %511 = vmatpush2.bf16.msra.mxu0 0
          %512 = vmatprep.subr.bf16.mxu0 0
          %513 = vmatpush2.bf16.msra.mxu0 0
          %514 = vmatprep.subr.bf16.mxu0 0
          %515 = vmatpush2.bf16.msra.mxu0 0
          %516 = vmatprep.subr.bf16.mxu0 0
          %517 = vmatpush2.bf16.msra.mxu0 0
          %518 = vmatprep.subr.bf16.mxu0 0
          %519 = vmatpush2.bf16.msra.mxu0 0
          %520 = vmatprep.subr.bf16.mxu0 0
          %521 = vmatpush2.bf16.msra.mxu0 0
          %522 = vmatprep.mubr.bf16.mxu0 0
          %523 = vmatmul.mubr.bf16.gmra.mxu0 %v488
          %v524 = vpop.f32.mrf.mxu0
          %v525 = vadd.f32 %v474, %v524
          %v526 = vpop.f32.mrf.mxu0
          %v527 = vpop.f32.mrf.mxu0
          %v528 = vadd.f32 %v479, %v527
          %v529 = vpop.f32.mrf.mxu0
          %530 = vdwg.mxu0
          %v531 = vmax.f32 %v525, 0.0
          %v532 = vmax.f32 %v528, 0.0
          %v533 = vld [vmem:[%s4] sm:$0xff]
          %v534 = vld [vmem:[%s4 + $0x8] sm:$0xff]
          %v535 = vmul.f32 %v531, %v533
          %v536 = vmul.f32 %v532, %v534
          %v537 = vpack.c.bf16 %v536, %v535
          %v538 = vld [vmem:[%s5] sm:$0xff]
          %v539 = vld [vmem:[%s5 + $0x8] sm:$0xff]
          %v540 = vld [vmem:[%s5 + $0x10] sm:$0xff]
          %v541 = vld [vmem:[%s5 + $0x18] sm:$0xff]
          %v542 = vld [vmem:[%s5 + $0x20] sm:$0xff]
          %v543 = vld [vmem:[%s5 + $0x28] sm:$0xff]
          %v544 = vld [vmem:[%s5 + $0x30] sm:$0x11]
          %v552 = vunpack.c.l.b16 %v538
          %v553 = vunpack.c.h.b16 %v538
          %v554 = vunpack.c.l.b16 %v539
          %v555 = vunpack.c.h.b16 %v539
          %v556 = vunpack.c.l.b16 %v540
          %v557 = vunpack.c.h.b16 %v540
          %v558 = vunpack.c.l.b16 %v541
          %v559 = vunpack.c.h.b16 %v541
          %v560 = vunpack.c.l.b16 %v542
          %v561 = vunpack.c.h.b16 %v542
          %v562 = vunpack.c.l.b16 %v543
          %v563 = vunpack.c.h.b16 %v543
          %v564 = vunpack.c.l.b16 %v544
          %v565 = vunpack.c.h.b16 %v544
          %v566 = vpack.c.b16 %v554, %v552
          %v567 = vpack.c.b16 %v555, %v553
          %v568 = vpack.c.b16 %v558, %v556
          %v569 = vpack.c.b16 %v559, %v557
          %v570 = vpack.c.b16 %v562, %v560
          %v571 = vpack.c.b16 %v563, %v561
          %v572 = vpack.c.b16 %v564, %v564
          %v573 = vpack.c.b16 %v565, %v565
          %v581 = vsel %vm458, %v537, 0
          %vm583 = vcmask 1040384
          %v585 = vsel %vm583, %v572, 0
          %v588 = vsel %vm583, %v573, 0
          %590 = vmatprep.subr.bf16.mxu0 0
          %591 = vmatpush1.bf16.msra.mxu0 0
          %592 = vmatprep.subr.bf16.mxu0 0
          %593 = vmatpush1.bf16.msra.mxu0 0
          %594 = vmatprep.subr.bf16.mxu0 0
          %595 = vmatpush1.bf16.msra.mxu0 0
          %596 = vmatprep.subr.bf16.mxu0 0
          %597 = vmatpush1.bf16.msra.mxu0 0
          %598 = vmatprep.subr.bf16.mxu0 %v588
          %599 = vmatpush1.bf16.msra.mxu0 %v585
          %600 = vmatprep.subr.bf16.mxu0 %v571
          %601 = vmatpush1.bf16.msra.mxu0 %v570
          %602 = vmatprep.subr.bf16.mxu0 %v569
          %603 = vmatpush1.bf16.msra.mxu0 %v568
          %604 = vmatprep.subr.bf16.mxu0 %v567
          %605 = vmatpush1.bf16.msra.mxu0 %v566
          %606 = vmatprep.subr.bf16.mxu0 0
          %607 = vmatpush2.bf16.msra.mxu0 0
          %608 = vmatprep.subr.bf16.mxu0 0
          %609 = vmatpush2.bf16.msra.mxu0 0
          %610 = vmatprep.subr.bf16.mxu0 0
          %611 = vmatpush2.bf16.msra.mxu0 0
          %612 = vmatprep.subr.bf16.mxu0 0
          %613 = vmatpush2.bf16.msra.mxu0 0
          %614 = vmatprep.subr.bf16.mxu0 0
          %615 = vmatpush2.bf16.msra.mxu0 0
          %616 = vmatprep.subr.bf16.mxu0 0
          %617 = vmatpush2.bf16.msra.mxu0 0
          %618 = vmatprep.subr.bf16.mxu0 0
          %619 = vmatpush2.bf16.msra.mxu0 0
          %620 = vmatprep.subr.bf16.mxu0 0
          %621 = vmatpush2.bf16.msra.mxu0 0
          %622 = vmatprep.mubr.bf16.mxu0 0
          %623 = vmatmul.mubr.bf16.gmra.mxu0 %v581
          %v624 = vpop.f32.mrf.mxu0
          %v625 = vadd.f32 0.0, %v624
          %v626 = vpop.f32.mrf.mxu0
          %v627 = vadd.f32 0.0, %v626
          %v628 = vpop.f32.mrf.mxu0
          %v629 = vadd.f32 0.0, %v628
          %v630 = vpop.f32.mrf.mxu0
          %v631 = vadd.f32 0.0, %v630
          %632 = vdwg.mxu0
          %633 = vst [vmem:[%s266 + $0x20] sm:$0xff] %v625
          %634 = vst [vmem:[%s266 + $0x28] sm:$0xff] %v627
          %635 = vst [vmem:[%s266 + $0x30] sm:$0xff] %v629
          %636 = vst [vmem:[%s266 + $0x38] sm:$0xff] %v631
        $region48: #{tpu_custom_call.1} parent=43 // pred_fallthru
          _
        %s637 = sand.u32 %s173, 1
        %s638 = scalar_lea.sflag [#allocation4], %s637
        %s639 = sand.u32 %s173, 1
        %s640 = smul.addr %s639, 64
        %s641 = scalar_lea.vmem [#allocation3], %s640
        // Predicated region
        $region49: #{tpu_custom_call.1} parent=43 // pred_check
          %p642 = pneg %p183
        $region50: #{tpu_custom_call.1} parent=43 // pred_check_branch
          %644 = sbr.rel (%p642) target = $region52
        $region51: #{tpu_custom_call.1} parent=43 // pred_region
          %s646 = ssub.s32 1024, 1024
          %647 = vsyncadd %s638, %s646
          %s648 = smul.addr %s24, 8
          %s649 = smul.addr %s648, 128
          %s650 = scalar_lea.hbm %s6, %s649
          %s651 = sshll.u32 %s641, 4
          %s652 = int_to_ptr.vmem [resolvable:$true] %s651
          %657 = dma.vmem_to_hbm [thread:$0]  %s652, 1024, %s650, %s638, 256, 256, 16
        $region52: #{tpu_custom_call.1} parent=43 // pred_fallthru
          _
      $region44: #{tpu_custom_call.1} parent=5 // pred_fallthru
        _
      %p658 = scmp.le.s32.totalorder 2, %s15
      // Predicated region
      $region53: #{tpu_custom_call.1} parent=5 // pred_check
        %p659 = pneg %p658
      $region54: #{tpu_custom_call.1} parent=5 // pred_check_branch
        %661 = sbr.rel (%p659) target = $region56
      $region55: #{tpu_custom_call.1} parent=5 // pred_region
        %s662 = ssub.s32 %s15, 2
        // Predicated region
        $region57: #{tpu_custom_call.1} parent=55 // pred_check
          %p663 = pneg %p189
        $region58: #{tpu_custom_call.1} parent=55 // pred_check_branch
          %665 = sbr.rel (%p663) target = $region60
        $region59: #{tpu_custom_call.1} parent=55 // pred_region
          %s666 = sand.u32 %s174, 1
          %s667 = scalar_lea.sflag [#allocation4], %s666
          %s668 = sand.u32 %s174, 1
          %s669 = smul.addr %s668, 64
          %s670 = scalar_lea.vmem [#allocation3], %s669
          %671 = dma.done %s667, 1024
        $region60: #{tpu_custom_call.1} parent=55 // pred_fallthru
          _
      $region56: #{tpu_custom_call.1} parent=5 // pred_fallthru
        _
    $region6: #{tpu_custom_call.1} parent=1 // loop_footer
      %s19 = sadd.s32 1, %s15
    $region7: #{tpu_custom_call.1} parent=1 // loop_footer_branch
      %14 = sbr.rel target = $region3
    $region8: #{tpu_custom_call.1} parent=1 // loop_exit
      _
    %672 = vsyncpa [#allocation4], 1
    %s673 = scalar_lea.sflag [#allocation4], 1
    %674 = vsyncpa %s673, 1

</llo_original>
